<compile_context>
chip_gen: v7x
topology: tpu7x:2x2x1
jax: 0.10.0
libtpu: 0.0.40
codegen_flags: <defaults>
</compile_context>

<pallas_src>
import functools

import jax
import jax.numpy as jnp
from jax.experimental import pallas as pl
from jax.experimental.pallas import tpu as pltpu


_SMALL_BLOCK_F32_BYTES = 8 * 1024 * 1024   # single-block path cap (f32 working set)
_TARGET_TILE_IN_BYTES = 4 * 1024 * 1024    # per-tile HBM chunk target
_MAX_TILE_F32_BYTES = 8 * 1024 * 1024      # per-tile f32 working-set hard cap
_VMEM_LIMIT_BYTES = 48 * 1024 * 1024       # < v7x's 64 MiB/TC physical VMEM
_SLAB_COLS = 1024                          # fallback slab width (lane-dense)


def _round_up(a, b):
    return (a + b - 1) // b * b


# ---------------------------------------------------------------------------
# Kernels
# ---------------------------------------------------------------------------
def _small_softmax_kernel(x_ref, o_ref):
    # Whole tensor in one VMEM block; f32 accumulation even for bf16 inputs.
    x = x_ref[...].astype(jnp.float32)
    e = jnp.exp(x - jnp.max(x))
    o_ref[...] = (e * (1.0 / jnp.sum(e))).astype(o_ref.dtype)


def _partial_reduce_kernel(x_ref, m_ref, s_ref, *, tile_rows, valid_rows,
                           needs_mask):
    # Per-tile partial max and sum-of-exp (relative to the tile's own max).
    # Partials are independent per grid step -> the grid axis can be parallel.
    x = x_ref[...].astype(jnp.float32)
    if needs_mask:  # last tile may read out-of-bounds rows: mask them to -inf
        row = (jax.lax.broadcasted_iota(jnp.int32, x.shape, 0)
               + pl.program_id(0) * tile_rows)
        x = jnp.where(row < valid_rows, x, -jnp.inf)
    m = jnp.max(x)
    safe_m = jnp.where(m == -jnp.inf, 0.0, m)     # avoid exp(-inf - -inf)=NaN
    s = jnp.sum(jnp.exp(x - safe_m))
    m_ref[...] = jnp.full(m_ref.shape, m, jnp.float32)
    s_ref[...] = jnp.full(s_ref.shape, s, jnp.float32)


def _normalize_kernel(b_ref, x_ref, o_ref):
    # out = exp(x - b), b = global_max + log(global_sum) read once from SMEM.
    x = x_ref[...].astype(jnp.float32)
    o_ref[...] = jnp.exp(x - b_ref[0, 0]).astype(o_ref.dtype)


# ---------------------------------------------------------------------------
# pallas_call wrappers
# ---------------------------------------------------------------------------
def _softmax_small(x2, out_dtype):
    n = x2.size
    return pl.pallas_call(
        _small_softmax_kernel,
        out_shape=jax.ShapeDtypeStruct(x2.shape, out_dtype),
        in_specs=[pl.BlockSpec(x2.shape, lambda: (0, 0))],
        out_specs=pl.BlockSpec(x2.shape, lambda: (0, 0)),
        compiler_params=pltpu.CompilerParams(
            vmem_limit_bytes=_VMEM_LIMIT_BYTES),
        cost_estimate=pl.CostEstimate(
            flops=4 * n, transcendentals=n,
            bytes_accessed=n * (x2.dtype.itemsize
                                + jnp.dtype(out_dtype).itemsize)),
    )(x2)


def _softmax_2d_tiled(x2, out_dtype):
    R, C = x2.shape
    itemsize = x2.dtype.itemsize
    c_pad = _round_up(C, 128)

    # Tile-row choice: target ~4 MiB of HBM per tile (dtype-aware), capped by
    # an 8 MiB f32 working set (VMEM-padded lanes), rows a multiple of 8.
    cap_rows = max(8, (_MAX_TILE_F32_BYTES // (c_pad * 4)) // 8 * 8)
    tgt_rows = max(8, (_TARGET_TILE_IN_BYTES // (C * itemsize)) // 8 * 8)
    tile_rows = min(cap_rows, tgt_rows, _round_up(R, 8))
    num_tiles = pl.cdiv(R, tile_rows)
    needs_mask = (R % tile_rows) != 0

    n = x2.size
    in_bytes = n * itemsize
    out_bytes = n * jnp.dtype(out_dtype).itemsize

    # ---- Pass 1: per-tile partials (parallel across TensorCores on v7x) ----
    kernel1 = functools.partial(_partial_reduce_kernel, tile_rows=tile_rows,
                                valid_rows=R, needs_mask=needs_mask)
    m_parts, s_parts = pl.pallas_call(
        kernel1,
        grid=(num_tiles,),
        out_shape=(jax.ShapeDtypeStruct((num_tiles, 8, 128), jnp.float32),
                   jax.ShapeDtypeStruct((num_tiles, 8, 128), jnp.float32)),
        in_specs=[pl.BlockSpec((tile_rows, C), lambda i: (i, 0))],
        out_specs=(pl.BlockSpec((1, 8, 128), lambda i: (i, 0, 0)),
                   pl.BlockSpec((1, 8, 128), lambda i: (i, 0, 0))),
        compiler_params=pltpu.CompilerParams(
            dimension_semantics=("parallel",),
            vmem_limit_bytes=_VMEM_LIMIT_BYTES),
        cost_estimate=pl.CostEstimate(
            flops=3 * n, transcendentals=n,
            bytes_accessed=in_bytes + num_tiles * 8 * 128 * 4 * 2),
    )(x2)

    # ---- Combine O(num_tiles) partials in plain JAX (tiny, NaN-safe) ----
    m_p = m_parts[:, 0, 0]
    s_p = s_parts[:, 0, 0]
    g_m = jnp.max(m_p)
    g_s = jnp.sum(s_p * jnp.exp(m_p - g_m))   # s_p==0 where m_p==-inf -> 0
    b = (g_m + jnp.log(g_s)).reshape(1, 1).astype(jnp.float32)

    # ---- Pass 2: elementwise normalize, b passed via SMEM ----
    out = pl.pallas_call(
        _normalize_kernel,
        grid=(num_tiles,),
        out_shape=jax.ShapeDtypeStruct((R, C), out_dtype),
        in_specs=[pl.BlockSpec(memory_space=pltpu.MemorySpace.SMEM),
                  pl.BlockSpec((tile_rows, C), lambda i: (i, 0))],
        out_specs=pl.BlockSpec((tile_rows, C), lambda i: (i, 0)),
        compiler_params=pltpu.CompilerParams(
            dimension_semantics=("parallel",),
            vmem_limit_bytes=_VMEM_LIMIT_BYTES),
        cost_estimate=pl.CostEstimate(
            flops=2 * n, transcendentals=n,
            bytes_accessed=in_bytes + out_bytes),
    )(b, x2)
    return out


def softmax(x):
    """Pallas implementation of the PyTorch `Softmax` module's forward."""
    orig_shape = x.shape
    dtype = x.dtype
    n = x.size
    if n == 0:
        return x

    # Natural 2D view (free reshape, no copy).
    if x.ndim >= 2:
        x2 = x.reshape(-1, x.shape[-1])
    else:
        x2 = x.reshape(1, -1)
    R, C = x2.shape
    r_pad, c_pad = _round_up(R, 8), _round_up(C, 128)

    # Small/medium: whole tensor VMEM-resident, single pass over HBM each way.
    if r_pad * c_pad * 4 <= _SMALL_BLOCK_F32_BYTES:
        return _softmax_small(x2, dtype).reshape(orig_shape)

    # Large: two-pass tiled path over the natural layout (no padding copies),
    # as long as an 8-row tile fits the per-tile VMEM budget.
    if 8 * c_pad * 4 <= _MAX_TILE_F32_BYTES and R > 1:
        return _softmax_2d_tiled(x2, dtype).reshape(orig_shape)

    # Fallback (huge 1-D inputs / extremely wide rows): lane-dense slab.
    flat = x.reshape(-1)
    pad = (-n) % _SLAB_COLS
    if pad:
        # TODO(synk): the -inf pad + output slice costs extra HBM traffic; only
        # hit for huge 1-D inputs whose size is not a multiple of 1024.
        flat = jnp.concatenate([flat, jnp.full((pad,), -jnp.inf, dtype=dtype)])
    out2 = _softmax_2d_tiled(flat.reshape(-1, _SLAB_COLS), dtype)
    return out2.reshape(-1)[:n].reshape(orig_shape)


# ---------------------------------------------------------------------------
# Self-test
# ---------------------------------------------------------------------------
if __name__ == "__main__":
    def reference(x):
        xf = x.astype(jnp.float32)
        e = jnp.exp(xf - jnp.max(xf))
        return e / jnp.sum(e)

    key = jax.random.PRNGKey(0)
    k1, k2, k3, k4 = jax.random.split(key, 4)

    # 1) Small path, typical module-style input.
    x1 = jax.random.normal(k1, (2, 4, 16, 16), dtype=jnp.float32)
    y1 = jax.block_until_ready(softmax(x1))
    assert y1.shape == x1.shape and y1.dtype == x1.dtype
    assert jnp.allclose(y1, reference(x1), atol=1e-7, rtol=1e-5)
    assert jnp.allclose(jnp.sum(y1), 1.0, atol=1e-5)

    # 2) Tiled two-pass path; non-divisible rows exercise the in-kernel mask.
    x2 = jax.random.normal(k2, (2304, 1000), dtype=jnp.float32)
    y2 = jax.block_until_ready(softmax(x2))
    assert y2.shape == x2.shape and y2.dtype == x2.dtype
    assert jnp.allclose(y2, reference(x2), atol=1e-8, rtol=1e-3)
    assert jnp.allclose(jnp.sum(y2), 1.0, atol=1e-3)

    # 3) bf16 input (f32 accumulation, cast only at the store).
    x3 = jax.random.normal(k3, (96, 160), dtype=jnp.bfloat16)
    y3 = jax.block_until_ready(softmax(x3))
    assert y3.shape == x3.shape and y3.dtype == x3.dtype
    assert jnp.allclose(y3.astype(jnp.float32), reference(x3),
                        atol=2e-7, rtol=2e-2)
    assert jnp.allclose(jnp.sum(y3.astype(jnp.float32)), 1.0, atol=5e-3)

    # 4) Fallback slab path (large 1-D, size not a multiple of 1024).
    x4 = jax.random.normal(k4, (2_100_003,), dtype=jnp.float32)
    y4 = jax.block_until_ready(softmax(x4))
    assert y4.shape == x4.shape and y4.dtype == x4.dtype
    assert jnp.allclose(y4, reference(x4), atol=1e-8, rtol=1e-3)
    assert jnp.allclose(jnp.sum(y4), 1.0, atol=1e-3)

    print("KERNEL_OK")
</pallas_src>

<mosaic_0001>
module attributes {stable_mosaic.version = 11 : i64} {
  func.func @_small_softmax_kernel(%arg0: memref<128x16xf32, #tpu.memory_space<vmem>>, %arg1: memref<128x16xf32, #tpu.memory_space<vmem>>) attributes {dimension_semantics = [], scalar_prefetch = 0 : i64, scratch_operands = 0 : i64, tpu.core_type = #tpu.core_type<tc>} {
    %c0 = arith.constant 0 : index
    %c0_0 = arith.constant 0 : index
    %0 = vector.load %arg0[%c0, %c0_0] : memref<128x16xf32, #tpu.memory_space<vmem>>, vector<128x16xf32>
    %1 = vector.shape_cast %0 : vector<128x16xf32> to vector<1x128x16xf32>
    %cst = arith.constant dense<0xFF800000> : vector<1xf32>
    %2 = vector.multi_reduction <maximumf>, %1, %cst [1, 2] : vector<1x128x16xf32> to vector<1xf32>
    %3 = vector.shape_cast %2 : vector<1xf32> to vector<1x1x1xf32>
    %4 = vector.extract %3[0, 0, 0] : f32 from vector<1x1x1xf32>
    %5 = vector.broadcast %4 : f32 to vector<128x16xf32>
    %6 = arith.subf %0, %5 : vector<128x16xf32>
    %7 = math.exp %6 : vector<128x16xf32>
    %8 = vector.shape_cast %7 : vector<128x16xf32> to vector<1x128x16xf32>
    %cst_1 = arith.constant dense<0.000000e+00> : vector<1xf32>
    %9 = vector.multi_reduction <add>, %8, %cst_1 [1, 2] : vector<1x128x16xf32> to vector<1xf32>
    %10 = vector.shape_cast %9 : vector<1xf32> to vector<1x1x1xf32>
    %11 = vector.extract %10[0, 0, 0] : f32 from vector<1x1x1xf32>
    %cst_2 = arith.constant 1.000000e+00 : f32
    %12 = arith.divf %cst_2, %11 : f32
    %13 = vector.broadcast %12 : f32 to vector<128x16xf32>
    %14 = arith.mulf %7, %13 : vector<128x16xf32>
    %c0_3 = arith.constant 0 : index
    %c0_4 = arith.constant 0 : index
    %15 = vector.load %arg1[%c0_3, %c0_4] : memref<128x16xf32, #tpu.memory_space<vmem>>, vector<128x16xf32>
    tpu.vector_store %arg1[%c0_3, %c0_4], %14 {strides = array<i32>} : memref<128x16xf32, #tpu.memory_space<vmem>>, vector<128x16xf32>,
    return
  }
}

</mosaic_0001>

<llo_original>
// kernel: tpu_custom_call.1
$region0: #{tpu_custom_call.1}
  #allocation0 [shape = 'u32[]', space=smem, size = 0x4, offset = 0x4, fixed_abs, tag = 'smem constant byte address 0x4 - core index']
  #allocation1 [shape = 'u32[144,128]{1,0:T(1,128)}', space=vmem, size = 0x12000, scoped, tag = 'internal scratch']
  %s0 = inlined_call_operand.vmem [shape: f32[128,16], index: 0, kind: input, shape index: {}]
  %s1 = inlined_call_operand.vmem [shape: f32[128,16], index: 1, kind: output, shape index: {}]
  %s2 = sld [smem:[#allocation0]]
  $region14: #{tpu_custom_call.1} parent=0
    _
  %s4 = ssub.s32 1, %s2
  %s5 = scalar_select 0, %s4, %s2
  // Predicated region
  $region2: #{tpu_custom_call.1} parent=0 // pred_check
    _
  $region3: #{tpu_custom_call.1} parent=0 // pred_check_branch
    %7 = sbr.rel (0) target = $region5
  $region4: #{tpu_custom_call.1} parent=0 // pred_region
    _
  $region5: #{tpu_custom_call.1} parent=0 // pred_fallthru
    _
  %v8 = vld [vmem:[%s0] sm:$0xff]
  %v9 = vld [vmem:[%s0 + $0x8] sm:$0xff]
  %v10 = vld [vmem:[%s0 + $0x10] sm:$0xff]
  %v11 = vld [vmem:[%s0 + $0x18] sm:$0xff]
  %v12 = vld [vmem:[%s0 + $0x20] sm:$0xff]
  %v13 = vld [vmem:[%s0 + $0x28] sm:$0xff]
  %v14 = vld [vmem:[%s0 + $0x30] sm:$0xff]
  %v15 = vld [vmem:[%s0 + $0x38] sm:$0xff]
  %v16 = vld [vmem:[%s0 + $0x40] sm:$0xff]
  %v17 = vld [vmem:[%s0 + $0x48] sm:$0xff]
  %v18 = vld [vmem:[%s0 + $0x50] sm:$0xff]
  %v19 = vld [vmem:[%s0 + $0x58] sm:$0xff]
  %v20 = vld [vmem:[%s0 + $0x60] sm:$0xff]
  %v21 = vld [vmem:[%s0 + $0x68] sm:$0xff]
  %v22 = vld [vmem:[%s0 + $0x70] sm:$0xff]
  %v23 = vld [vmem:[%s0 + $0x78] sm:$0xff]
  %vm24 = vcmask 130048
  %v25 = vsel %vm24, %v8, -inf
  %v26 = vsel %vm24, %v9, -inf
  %v27 = vsel %vm24, %v10, -inf
  %v28 = vsel %vm24, %v11, -inf
  %v29 = vsel %vm24, %v12, -inf
  %v30 = vmax.f32 %v25, %v29
  %v31 = vsel %vm24, %v13, -inf
  %v32 = vmax.f32 %v26, %v31
  %v33 = vsel %vm24, %v14, -inf
  %v34 = vmax.f32 %v27, %v33
  %v35 = vsel %vm24, %v15, -inf
  %v36 = vmax.f32 %v28, %v35
  %v37 = vsel %vm24, %v16, -inf
  %v38 = vmax.f32 %v30, %v37
  %v39 = vsel %vm24, %v17, -inf
  %v40 = vmax.f32 %v32, %v39
  %v41 = vsel %vm24, %v18, -inf
  %v42 = vmax.f32 %v34, %v41
  %v43 = vsel %vm24, %v19, -inf
  %v44 = vmax.f32 %v36, %v43
  %v45 = vsel %vm24, %v20, -inf
  %v46 = vmax.f32 %v38, %v45
  %v47 = vsel %vm24, %v21, -inf
  %v48 = vmax.f32 %v40, %v47
  %v49 = vsel %vm24, %v22, -inf
  %v50 = vmax.f32 %v42, %v49
  %v51 = vsel %vm24, %v23, -inf
  %v52 = vmax.f32 %v44, %v51
  %v53 = vmax.f32 %v46, %v48
  %v54 = vmax.f32 %v50, %v52
  %v55 = vmax.f32 %v53, %v54
  %56 = vmax.xlane.f32.xlu0 %v55
  %v57 = vpop.xlane.xlu0 %56
  %v58 = vrot.slane %v57, 4
  %v59 = vmax.f32 %v57, %v58
  %v60 = vrot.slane %v59, 2
  %v61 = vmax.f32 %v59, %v60
  %v62 = vrot.slane %v61, 1
  %v63 = vmax.f32 %v61, %v62
  %s64 = vtos %v63
  %v65 = vstv %s64
  %v66 = vsub.f32 %v8, %v65
  %v67 = vsub.f32 %v9, %v65
  %v68 = vsub.f32 %v10, %v65
  %v69 = vsub.f32 %v11, %v65
  %v70 = vsub.f32 %v12, %v65
  %v71 = vsub.f32 %v13, %v65
  %v72 = vsub.f32 %v14, %v65
  %v73 = vsub.f32 %v15, %v65
  %v74 = vsub.f32 %v16, %v65
  %v75 = vsub.f32 %v17, %v65
  %v76 = vsub.f32 %v18, %v65
  %v77 = vsub.f32 %v19, %v65
  %v78 = vsub.f32 %v20, %v65
  %v79 = vsub.f32 %v21, %v65
  %v80 = vsub.f32 %v22, %v65
  %v81 = vsub.f32 %v23, %v65
  %v82 = vmul.f32 %v66, 1.442695
  %v83 = vpow.pop %v82
  %v84 = vmul.f32 %v67, 1.442695
  %v85 = vpow.pop %v84
  %v86 = vmul.f32 %v68, 1.442695
  %v87 = vpow.pop %v86
  %v88 = vmul.f32 %v69, 1.442695
  %v89 = vpow.pop %v88
  %v90 = vmul.f32 %v70, 1.442695
  %v91 = vpow.pop %v90
  %v92 = vmul.f32 %v71, 1.442695
  %v93 = vpow.pop %v92
  %v94 = vmul.f32 %v72, 1.442695
  %v95 = vpow.pop %v94
  %v96 = vmul.f32 %v73, 1.442695
  %v97 = vpow.pop %v96
  %v98 = vmul.f32 %v74, 1.442695
  %v99 = vpow.pop %v98
  %v100 = vmul.f32 %v75, 1.442695
  %v101 = vpow.pop %v100
  %v102 = vmul.f32 %v76, 1.442695
  %v103 = vpow.pop %v102
  %v104 = vmul.f32 %v77, 1.442695
  %v105 = vpow.pop %v104
  %v106 = vmul.f32 %v78, 1.442695
  %v107 = vpow.pop %v106
  %v108 = vmul.f32 %v79, 1.442695
  %v109 = vpow.pop %v108
  %v110 = vmul.f32 %v80, 1.442695
  %v111 = vpow.pop %v110
  %v112 = vmul.f32 %v81, 1.442695
  %v113 = vpow.pop %v112
  %v114 = vsel %vm24, %v83, 0.0
  %v115 = vsel %vm24, %v85, 0.0
  %v116 = vadd.f32 %v114, %v115
  %v117 = vsel %vm24, %v87, 0.0
  %v118 = vadd.f32 %v116, %v117
  %v119 = vsel %vm24, %v89, 0.0
  %v120 = vadd.f32 %v118, %v119
  %v121 = vsel %vm24, %v91, 0.0
  %v122 = vadd.f32 %v120, %v121
  %v123 = vsel %vm24, %v93, 0.0
  %v124 = vadd.f32 %v122, %v123
  %v125 = vsel %vm24, %v95, 0.0
  %v126 = vadd.f32 %v124, %v125
  %v127 = vsel %vm24, %v97, 0.0
  %v128 = vadd.f32 %v126, %v127
  %v129 = vsel %vm24, %v99, 0.0
  %v130 = vadd.f32 %v128, %v129
  %v131 = vsel %vm24, %v101, 0.0
  %v132 = vadd.f32 %v130, %v131
  %v133 = vsel %vm24, %v103, 0.0
  %v134 = vadd.f32 %v132, %v133
  %v135 = vsel %vm24, %v105, 0.0
  %v136 = vadd.f32 %v134, %v135
  %v137 = vsel %vm24, %v107, 0.0
  %v138 = vadd.f32 %v136, %v137
  %v139 = vsel %vm24, %v109, 0.0
  %v140 = vadd.f32 %v138, %v139
  %v141 = vsel %vm24, %v111, 0.0
  %v142 = vadd.f32 %v140, %v141
  %v143 = vsel %vm24, %v113, 0.0
  %v144 = vadd.f32 %v142, %v143
  %145 = vadd.xlane.f32.xlu0 %v144
  %v146 = vpop.xlane.xlu0 %145
  %v147 = vrot.slane %v146, 4
  %v148 = vadd.f32 %v146, %v147
  %v149 = vrot.slane %v148, 2
  %v150 = vadd.f32 %v148, %v149
  %v151 = vrot.slane %v150, 1
  %v152 = vadd.f32 %v150, %v151
  %s153 = vtos %v152
  %v154 = vstv %s153
  %v155 = vrcp.pop %v154
  %s156 = vtos %v155
  %v157 = vstv %s156
  %v158 = vmul.f32 %v83, %v157
  %v159 = vmul.f32 %v85, %v157
  %v160 = vmul.f32 %v87, %v157
  %v161 = vmul.f32 %v89, %v157
  %v162 = vmul.f32 %v91, %v157
  %v163 = vmul.f32 %v93, %v157
  %v164 = vmul.f32 %v95, %v157
  %v165 = vmul.f32 %v97, %v157
  %v166 = vmul.f32 %v99, %v157
  %v167 = vmul.f32 %v101, %v157
  %v168 = vmul.f32 %v103, %v157
  %v169 = vmul.f32 %v105, %v157
  %v170 = vmul.f32 %v107, %v157
  %v171 = vmul.f32 %v109, %v157
  %v172 = vmul.f32 %v111, %v157
  %v173 = vmul.f32 %v113, %v157
  %174 = vst.msk [vmem:[%s1] sm:$0xff] %vm24, %v158
  %175 = vst.msk [vmem:[%s1 + $0x8] sm:$0xff] %vm24, %v159
  %176 = vst.msk [vmem:[%s1 + $0x10] sm:$0xff] %vm24, %v160
  %177 = vst.msk [vmem:[%s1 + $0x18] sm:$0xff] %vm24, %v161
  %178 = vst.msk [vmem:[%s1 + $0x20] sm:$0xff] %vm24, %v162
  %179 = vst.msk [vmem:[%s1 + $0x28] sm:$0xff] %vm24, %v163
  %180 = vst.msk [vmem:[%s1 + $0x30] sm:$0xff] %vm24, %v164
  %181 = vst.msk [vmem:[%s1 + $0x38] sm:$0xff] %vm24, %v165
  %182 = vst.msk [vmem:[%s1 + $0x40] sm:$0xff] %vm24, %v166
  %183 = vst.msk [vmem:[%s1 + $0x48] sm:$0xff] %vm24, %v167
  %184 = vst.msk [vmem:[%s1 + $0x50] sm:$0xff] %vm24, %v168
  %185 = vst.msk [vmem:[%s1 + $0x58] sm:$0xff] %vm24, %v169
  %186 = vst.msk [vmem:[%s1 + $0x60] sm:$0xff] %vm24, %v170
  %187 = vst.msk [vmem:[%s1 + $0x68] sm:$0xff] %vm24, %v171
  %188 = vst.msk [vmem:[%s1 + $0x70] sm:$0xff] %vm24, %v172
  %189 = vst.msk [vmem:[%s1 + $0x78] sm:$0xff] %vm24, %v173
  // Predicated region
  $region6: #{tpu_custom_call.1} parent=0 // pred_check
    _
  $region7: #{tpu_custom_call.1} parent=0 // pred_check_branch
    %191 = sbr.rel (0) target = $region9
  $region8: #{tpu_custom_call.1} parent=0 // pred_region
    _
  $region9: #{tpu_custom_call.1} parent=0 // pred_fallthru
    _
  // Predicated region
  $region10: #{tpu_custom_call.1} parent=0 // pred_check
    _
  $region11: #{tpu_custom_call.1} parent=0 // pred_check_branch
    %193 = sbr.rel (0) target = $region13
  $region12: #{tpu_custom_call.1} parent=0 // pred_region
    _
  $region13: #{tpu_custom_call.1} parent=0 // pred_fallthru
    _

</llo_original>
